<compile_context>
chip_gen: v7x
topology: tpu7x:2x2x1
jax: 0.10.0
libtpu: 0.0.40
codegen_flags: <defaults>
</compile_context>

<pallas_src>
import functools

import jax
import jax.numpy as jnp
from jax.experimental import pallas as pl
from jax.experimental.pallas import tpu as pltpu


def _round_up(x, m):
    return (x + m - 1) // m * m


def _tweet_node_kernel(x_ref, w_ref, b_ref, o_ref):
    # Single fused matmul on the MXU, f32 accumulation, bias added once per tile
    # from a resident VMEM block, then a single lane-dense store.
    acc = jnp.dot(x_ref[...], w_ref[...], preferred_element_type=jnp.float32)
    o_ref[...] = (acc + b_ref[...]).astype(o_ref.dtype)


def tweet_node_forward(content, profile, params, *, tile_n=512):
    """content: [N, embedding_dim], profile: [N, tweet_profile_dim] -> [N, hidden_dim]."""
    wc, bc, wp, bp = params["wc"], params["bc"], params["wp"], params["bp"]

    n, e = content.shape
    _, p = profile.shape
    h2 = wc.shape[1]
    assert wp.shape[1] == h2, "content/property halves must have equal width"
    h = 2 * h2
    k = e + p

    dtype = content.dtype
    hp = _round_up(h, 128)          # lane-dense output (pad hidden to lane width)

    # ---- wrapper-side fusion: block-diagonal weight + concatenated bias ----
    w_fused = jnp.zeros((k, hp), dtype)
    w_fused = w_fused.at[:e, :h2].set(wc.astype(dtype))
    w_fused = w_fused.at[e:, h2:h].set(wp.astype(dtype))
    b_fused = jnp.zeros((1, hp), jnp.float32)
    b_fused = b_fused.at[0, :h2].set(bc.astype(jnp.float32))
    b_fused = b_fused.at[0, h2:h].set(bp.astype(jnp.float32))

    # ---- fuse inputs along the feature (lane) axis and pad batch to tile ----
    x_cat = jnp.concatenate([content, profile], axis=-1)        # [N, E+P]
    n_min = _round_up(n, 8)
    tile = n_min if n_min <= tile_n else tile_n                 # tile_n is 8-aligned
    n_pad = _round_up(n, tile)
    if n_pad > n:
        x_cat = jnp.pad(x_cat, ((0, n_pad - n), (0, 0)))

    grid = (n_pad // tile,)
    bytes_per = jnp.dtype(dtype).itemsize
    cost = pl.CostEstimate(
        flops=2 * n_pad * k * hp,
        transcendentals=0,
        bytes_accessed=bytes_per * (n_pad * k + k * hp + n_pad * hp) + 4 * hp,
    )

    out = pl.pallas_call(
        _tweet_node_kernel,
        out_shape=jax.ShapeDtypeStruct((n_pad, hp), dtype),
        grid_spec=pltpu.PrefetchScalarGridSpec(
            num_scalar_prefetch=0,
            grid=grid,
            in_specs=[
                pl.BlockSpec((tile, k), lambda i: (i, 0)),   # activations: tiled rows
                pl.BlockSpec((k, hp), lambda i: (0, 0)),     # fused weight: resident
                pl.BlockSpec((1, hp), lambda i: (0, 0)),     # fused bias:   resident
            ],
            out_specs=pl.BlockSpec((tile, hp), lambda i: (i, 0)),
        ),
        compiler_params=pltpu.CompilerParams(
            dimension_semantics=("parallel",),               # 2 TCs on v7x
            vmem_limit_bytes=32 * 1024 * 1024,               # above v5e's 16 MiB default
        ),
        cost_estimate=cost,
    )(x_cat, w_fused, b_fused)

    return out[:n, :h]


def init_params(key, tweet_profile_dim, embedding_dim, hidden_dim, dtype=jnp.float32):
    """Deterministic synthetic init (PyTorch Linear shapes, stored transposed [in, out])."""
    assert hidden_dim % 2 == 0, "hidden_dim must be even"
    h2 = hidden_dim // 2
    k1, k2, k3, k4 = jax.random.split(key, 4)
    return {
        "wc": jax.random.normal(k1, (embedding_dim, h2), dtype) * 0.02,
        "bc": jax.random.normal(k2, (h2,), dtype) * 0.02,
        "wp": jax.random.normal(k3, (tweet_profile_dim, h2), dtype) * 0.02,
        "bp": jax.random.normal(k4, (h2,), dtype) * 0.02,
    }


def reference_forward(content, profile, params):
    c = content @ params["wc"] + params["bc"]
    p = profile @ params["wp"] + params["bp"]
    return jnp.concatenate([c, p], axis=-1)


if __name__ == "__main__":
    tweet_profile_dim = 16
    embedding_dim = 32
    hidden_dim = 32
    batch = 8

    key = jax.random.PRNGKey(0)
    k_params, k_content, k_profile = jax.random.split(key, 3)

    params = init_params(k_params, tweet_profile_dim, embedding_dim, hidden_dim)
    content = jax.random.normal(k_content, (batch, embedding_dim), jnp.float32)
    profile = jax.random.normal(k_profile, (batch, tweet_profile_dim), jnp.float32)

    out = tweet_node_forward(content, profile, params)
    out = jax.block_until_ready(out)

    ref = reference_forward(content, profile, params)
    assert out.shape == (batch, hidden_dim), out.shape
    assert jnp.allclose(out, ref, atol=1e-5, rtol=1e-5), "mismatch vs reference"

    # Also exercise the tiled/padded path (batch not a multiple of the tile).
    big = 1037
    kc, kp2 = jax.random.split(jax.random.PRNGKey(1))
    content_b = jax.random.normal(kc, (big, embedding_dim), jnp.float32)
    profile_b = jax.random.normal(kp2, (big, tweet_profile_dim), jnp.float32)
    out_b = jax.block_until_ready(tweet_node_forward(content_b, profile_b, params))
    ref_b = reference_forward(content_b, profile_b, params)
    assert out_b.shape == (big, hidden_dim), out_b.shape
    assert jnp.allclose(out_b, ref_b, atol=1e-5, rtol=1e-5), "mismatch vs reference (tiled)"

    print("KERNEL_OK")
</pallas_src>

<mosaic_0001>
module attributes {stable_mosaic.version = 11 : i64} {
  func.func @_tweet_node_kernel(%arg0: i32, %arg1: memref<8x48xf32, #tpu.memory_space<vmem>>, %arg2: memref<48x128xf32, #tpu.memory_space<vmem>>, %arg3: memref<1x128xf32, #tpu.memory_space<vmem>>, %arg4: memref<8x128xf32, #tpu.memory_space<vmem>>) attributes {dimension_semantics = [#tpu.dimension_semantics<parallel>], iteration_bounds = array<i64: 1>, scalar_prefetch = 0 : i64, scratch_operands = 0 : i64, tpu.core_type = #tpu.core_type<tc>, window_params = [{transform_indices = @transform_0, window_bounds = array<i64: 8, 48>}, {pipeline_mode = #tpu.pipeline_mode<synchronous>, transform_indices = @transform_1, window_bounds = array<i64: 48, 128>}, {pipeline_mode = #tpu.pipeline_mode<synchronous>, transform_indices = @transform_2, window_bounds = array<i64: 1, 128>}, {transform_indices = @transform_3, window_bounds = array<i64: 8, 128>}]} {
    %c0 = arith.constant 0 : index
    %c0_0 = arith.constant 0 : index
    %0 = vector.load %arg1[%c0, %c0_0] : memref<8x48xf32, #tpu.memory_space<vmem>>, vector<8x48xf32>
    %c0_1 = arith.constant 0 : index
    %c0_2 = arith.constant 0 : index
    %1 = vector.load %arg2[%c0_1, %c0_2] : memref<48x128xf32, #tpu.memory_space<vmem>>, vector<48x128xf32>
    %cst = arith.constant dense<0.000000e+00> : vector<8x128xf32>
    %2 = tpu.matmul %0, %1, %cst {dimension_numbers = #tpu.dot_dimension_numbers<[1], [0], [0], [1], [0, 0, 1, 1], [], []>} : vector<8x48xf32>, vector<48x128xf32>, vector<8x128xf32> -> vector<8x128xf32>
    %c0_3 = arith.constant 0 : index
    %c0_4 = arith.constant 0 : index
    %3 = vector.load %arg3[%c0_3, %c0_4] : memref<1x128xf32, #tpu.memory_space<vmem>>, vector<1x128xf32>
    %4 = vector.broadcast %3 : vector<1x128xf32> to vector<8x128xf32>
    %5 = arith.addf %2, %4 : vector<8x128xf32>
    %c0_5 = arith.constant 0 : index
    %c0_6 = arith.constant 0 : index
    %6 = vector.load %arg4[%c0_5, %c0_6] : memref<8x128xf32, #tpu.memory_space<vmem>>, vector<8x128xf32>
    tpu.vector_store %arg4[%c0_5, %c0_6], %5 {strides = array<i32>} : memref<8x128xf32, #tpu.memory_space<vmem>>, vector<8x128xf32>,
    return
  }
  func.func @transform_0(%arg0: i32) -> (i32, i32) {
    %c0_i32 = arith.constant 0 : i32
    %c0_i32_0 = arith.constant 0 : i32
    return %arg0, %c0_i32 : i32, i32
  }
  func.func @transform_1(%arg0: i32) -> (i32, i32) {
    %c0_i32 = arith.constant 0 : i32
    %c0_i32_0 = arith.constant 0 : i32
    %c0_i32_1 = arith.constant 0 : i32
    return %c0_i32, %c0_i32_0 : i32, i32
  }
  func.func @transform_2(%arg0: i32) -> (i32, i32) {
    %c0_i32 = arith.constant 0 : i32
    %c0_i32_0 = arith.constant 0 : i32
    %c0_i32_1 = arith.constant 0 : i32
    return %c0_i32, %c0_i32_0 : i32, i32
  }
  func.func @transform_3(%arg0: i32) -> (i32, i32) {
    %c0_i32 = arith.constant 0 : i32
    %c0_i32_0 = arith.constant 0 : i32
    return %arg0, %c0_i32 : i32, i32
  }
}

</mosaic_0001>

<llo_original>
// kernel: tpu_custom_call.1
$region0: #{tpu_custom_call.1}
  #allocation0 [shape = 'u32[]', space=smem, size = 0x4, offset = 0x4, fixed_abs, tag = 'smem constant byte address 0x4 - core index']
  #allocation1 [shape = 'u32[144,128]{1,0:T(1,128)}', space=vmem, size = 0x12000, scoped, tag = 'internal scratch']
  %s0 = inlined_call_operand.hbm [shape: f32[8,48], index: 0, kind: input, shape index: {}]
  %s1 = inlined_call_operand.hbm [shape: f32[48,128], index: 1, kind: input, shape index: {}]
  %s2 = inlined_call_operand.vmem [shape: f32[1,128], index: 2, kind: input, shape index: {}]
  %s3 = inlined_call_operand.hbm [shape: f32[8,128], index: 3, kind: output, shape index: {}]
  %s4 = sld [smem:[#allocation0]]
  $region30: #{tpu_custom_call.1} parent=0
    _
  %s6 = ssub.s32 1, %s4
  %s7 = scalar_select 0, %s6, %s4
  $region1: #{tpu_custom_call.1} parent=0
    #allocation2 [shape = 'u8[4096]{0}', space=vmem, size = 0x1000, scoped, tag = 'input window, operand 0, single buffered']
    #allocation3 [shape = 's32[1]{0}', space=sflag, size = 0x4, scoped, tag = 'scoped memory for tpu_custom_call.1']
    #allocation4 [shape = 's32[1]{0}', space=sflag, size = 0x4, scoped, tag = 'scoped memory for tpu_custom_call.1']
    #allocation5 [shape = 'u8[24576]{0}', space=vmem, size = 0x6000, scoped, tag = 'input window, operand 1, single buffered']
    #allocation6 [shape = 's32[1]{0}', space=sflag, size = 0x4, scoped, tag = 'scoped memory for tpu_custom_call.1']
    #allocation7 [shape = 'u8[4096]{0}', space=vmem, size = 0x1000, scoped, tag = 'output window, operand 0, single buffered']
    %8 = vsyncpa [#allocation3], 0
    %9 = vsyncpa [#allocation6], 0
    %10 = vsyncpa [#allocation4], 0
    // Predicated region
    $region2: #{tpu_custom_call.1} parent=1 // pred_check
      _
    $region3: #{tpu_custom_call.1} parent=1 // pred_check_branch
      %12 = sbr.rel (0) target = $region5
    $region4: #{tpu_custom_call.1} parent=1 // pred_region
      %s14 = ssub.s32 128, 128
      %15 = vsyncadd [#allocation3], %s14
      %s17 = sshll.u32 [#allocation2], 4
      %s18 = int_to_ptr.vmem [resolvable:$true] %s17
      %20 = dma.hbm_to_vmem [thread:$0]  %s0, 128, %s18, [#allocation3]
    $region5: #{tpu_custom_call.1} parent=1 // pred_fallthru
      _
    // Predicated region
    $region6: #{tpu_custom_call.1} parent=1 // pred_check
      _
    $region7: #{tpu_custom_call.1} parent=1 // pred_check_branch
      %22 = sbr.rel (0) target = $region9
    $region8: #{tpu_custom_call.1} parent=1 // pred_region
      %s24 = ssub.s32 768, 768
      %25 = vsyncadd [#allocation6], %s24
      %s26 = sshll.u32 [#allocation5], 4
      %s27 = int_to_ptr.vmem [resolvable:$true] %s26
      %32 = dma.hbm_to_vmem [thread:$0]  %s1, 768, %s27, [#allocation6], 128, 128, 8
    $region9: #{tpu_custom_call.1} parent=1 // pred_fallthru
      _
    // Predicated region
    $region10: #{tpu_custom_call.1} parent=1 // pred_check
      _
    $region11: #{tpu_custom_call.1} parent=1 // pred_check_branch
      %34 = sbr.rel (0) target = $region13
    $region12: #{tpu_custom_call.1} parent=1 // pred_region
      _
    $region13: #{tpu_custom_call.1} parent=1 // pred_fallthru
      _
    // Predicated region
    $region14: #{tpu_custom_call.1} parent=1 // pred_check
      _
    $region15: #{tpu_custom_call.1} parent=1 // pred_check_branch
      %36 = sbr.rel (0) target = $region17
    $region16: #{tpu_custom_call.1} parent=1 // pred_region
      %37 = dma.done [#allocation3], 128
    $region17: #{tpu_custom_call.1} parent=1 // pred_fallthru
      _
    // Predicated region
    $region18: #{tpu_custom_call.1} parent=1 // pred_check
      _
    $region19: #{tpu_custom_call.1} parent=1 // pred_check_branch
      %39 = sbr.rel (0) target = $region21
    $region20: #{tpu_custom_call.1} parent=1 // pred_region
      %40 = dma.done [#allocation6], 768
    $region21: #{tpu_custom_call.1} parent=1 // pred_fallthru
      _
    %v41 = vld [vmem:[#allocation2] sm:$0xff]
    %v42 = vld [vmem:[#allocation5] sm:$0xff]
    %v43 = vld [vmem:[#allocation5 + $0x8] sm:$0xff]
    %v44 = vld [vmem:[#allocation5 + $0x10] sm:$0xff]
    %v45 = vld [vmem:[#allocation5 + $0x18] sm:$0xff]
    %v46 = vld [vmem:[#allocation5 + $0x20] sm:$0xff]
    %v47 = vld [vmem:[#allocation5 + $0x28] sm:$0xff]
    %v48 = vld [vmem:[%s2] sm:$0x1]
    %v50 = vlaneseq
    %v51 = vshrl.u32 %v50, 7
    %v52 = vsub.s32 0, %v51
    %v53 = vrot.slane %v48, %v52
    %vm55 = vcmask 392192
    %v57 = vsel %vm55, %v41, 0
    %59 = vmatprep.subr.mxu0 0.0
    %60 = vmatpush1.msra.mxu0 %v42
    %61 = vmatprep.subr.mxu0 0.0
    %62 = vmatpush1.msra.mxu0 %v43
    %63 = vmatprep.subr.mxu0 0.0
    %64 = vmatpush1.msra.mxu0 %v44
    %65 = vmatprep.subr.mxu0 0.0
    %66 = vmatpush1.msra.mxu0 %v45
    %67 = vmatprep.subr.mxu0 0.0
    %68 = vmatpush1.msra.mxu0 %v46
    %69 = vmatprep.subr.mxu0 0.0
    %70 = vmatpush1.msra.mxu0 %v47
    %71 = vmatprep.subr.mxu0 0.0
    %72 = vmatpush1.msra.mxu0 0.0
    %73 = vmatprep.subr.mxu0 0.0
    %74 = vmatpush1.msra.mxu0 0.0
    %75 = vmatprep.subr.mxu0 0.0
    %76 = vmatpush1.msra.mxu0 0.0
    %77 = vmatprep.subr.mxu0 0.0
    %78 = vmatpush1.msra.mxu0 0.0
    %79 = vmatprep.subr.mxu0 0.0
    %80 = vmatpush1.msra.mxu0 0.0
    %81 = vmatprep.subr.mxu0 0.0
    %82 = vmatpush1.msra.mxu0 0.0
    %83 = vmatprep.subr.mxu0 0.0
    %84 = vmatpush1.msra.mxu0 0.0
    %85 = vmatprep.subr.mxu0 0.0
    %86 = vmatpush1.msra.mxu0 0.0
    %87 = vmatprep.subr.mxu0 0.0
    %88 = vmatpush1.msra.mxu0 0.0
    %89 = vmatprep.subr.mxu0 0.0
    %90 = vmatpush1.msra.mxu0 0.0
    %91 = vmatprep.subr.mxu0 0.0
    %92 = vmatpush1.msra.mxu0 0.0
    %93 = vmatprep.subr.mxu0 0.0
    %94 = vmatpush1.msra.mxu0 0.0
    %95 = vmatprep.subr.mxu0 0.0
    %96 = vmatpush1.msra.mxu0 0.0
    %97 = vmatprep.subr.mxu0 0.0
    %98 = vmatpush1.msra.mxu0 0.0
    %99 = vmatprep.subr.mxu0 0.0
    %100 = vmatpush1.msra.mxu0 0.0
    %101 = vmatprep.subr.mxu0 0.0
    %102 = vmatpush1.msra.mxu0 0.0
    %103 = vmatprep.subr.mxu0 0.0
    %104 = vmatpush1.msra.mxu0 0.0
    %105 = vmatprep.subr.mxu0 0.0
    %106 = vmatpush1.msra.mxu0 0.0
    %107 = vmatprep.subr.mxu0 0.0
    %108 = vmatpush1.msra.mxu0 0.0
    %109 = vmatprep.subr.mxu0 0.0
    %110 = vmatpush1.msra.mxu0 0.0
    %111 = vmatprep.subr.mxu0 0.0
    %112 = vmatpush1.msra.mxu0 0.0
    %113 = vmatprep.subr.mxu0 0.0
    %114 = vmatpush1.msra.mxu0 0.0
    %115 = vmatprep.subr.mxu0 0.0
    %116 = vmatpush1.msra.mxu0 0.0
    %117 = vmatprep.subr.mxu0 0.0
    %118 = vmatpush1.msra.mxu0 0.0
    %119 = vmatprep.subr.mxu0 0.0
    %120 = vmatpush1.msra.mxu0 0.0
    %121 = vmatprep.subr.mxu0 0.0
    %122 = vmatpush1.msra.mxu0 0.0
    %123 = vmatprep.mubr.f32.mxu0 0.0
    %124 = vmatmul.mubr.f32.gmra.mrb[0].mxu0 %v57
    %v125 = vpop.f32.mrb[0].mxu0
    %v126 = vadd.f32 %v53, %v125
    %v127 = vpop.f32.mrb[0].mxu0
    %128 = vdwg.mxu0
    %129 = vst [vmem:[#allocation7] sm:$0xff] %v126
    // Predicated region
    $region22: #{tpu_custom_call.1} parent=1 // pred_check
      _
    $region23: #{tpu_custom_call.1} parent=1 // pred_check_branch
      %131 = sbr.rel (0) target = $region25
    $region24: #{tpu_custom_call.1} parent=1 // pred_region
      %s133 = ssub.s32 128, 128
      %134 = vsyncadd [#allocation4], %s133
      %s136 = sshll.u32 [#allocation7], 4
      %s137 = int_to_ptr.vmem [resolvable:$true] %s136
      %139 = dma.vmem_to_hbm [thread:$0]  %s137, 128, %s3, [#allocation4]
    $region25: #{tpu_custom_call.1} parent=1 // pred_fallthru
      _
    // Predicated region
    $region26: #{tpu_custom_call.1} parent=1 // pred_check
      _
    $region27: #{tpu_custom_call.1} parent=1 // pred_check_branch
      %141 = sbr.rel (0) target = $region29
    $region28: #{tpu_custom_call.1} parent=1 // pred_region
      %142 = dma.done [#allocation4], 128
    $region29: #{tpu_custom_call.1} parent=1 // pred_fallthru
      _
    %143 = vsyncpa [#allocation3], 1
    %144 = vsyncpa [#allocation6], 1
    %145 = vsyncpa [#allocation4], 1

</llo_original>
